<compile_context>
chip_gen: v7x
topology: tpu7x:2x2x1
jax: 0.10.0
libtpu: 0.0.40
codegen_flags: <defaults>
</compile_context>

<pallas_src>
import jax
import jax.numpy as jnp
from jax.experimental import pallas as pl
from jax.experimental.pallas import tpu as pltpu  # noqa: F401  (TPU backend)

_LANES = 128      # vreg lane width
_SUBLANES = 8     # vreg sublane depth (f32)


def _relu_slab_kernel(x_ref, o_ref):
    # Single elementwise ReLU on one lane-dense VMEM slab (VPU op).
    o_ref[...] = jnp.maximum(x_ref[...], 0)


@jax.jit
def relu4(x, y, z, w):
    """Apply ReLU to four arrays in one Pallas call via a fused lane-dense slab."""
    ins = (x, y, z, w)
    dtype = ins[0].dtype
    assert all(a.dtype == dtype for a in ins), "relu4 expects a common dtype"

    total = sum(a.size for a in ins)
    tile = _SUBLANES * _LANES
    padded_total = ((total + tile - 1) // tile) * tile   # pad to (8k, 128)
    rows = padded_total // _LANES

    # Fuse: ravel + concat + pad -> (rows, 128) lane-dense slab.
    flat = jnp.concatenate([a.reshape(-1) for a in ins])
    flat = jnp.pad(flat, (0, padded_total - total))
    slab = flat.reshape(rows, _LANES)

    out_slab = pl.pallas_call(
        _relu_slab_kernel,
        out_shape=jax.ShapeDtypeStruct((rows, _LANES), dtype),
        in_specs=[pl.BlockSpec((rows, _LANES), lambda: (0, 0))],
        out_specs=pl.BlockSpec((rows, _LANES), lambda: (0, 0)),
    )(slab)

    # Split the slab back into the original shapes.
    out_flat = out_slab.reshape(-1)
    outs = []
    off = 0
    for a in ins:
        outs.append(out_flat[off:off + a.size].reshape(a.shape))
        off += a.size
    return tuple(outs)


if __name__ == "__main__":
    key = jax.random.PRNGKey(0)
    kx, ky, kz, kw = jax.random.split(key, 4)

    # Small shapes consistent with four independent tensor inputs.
    x = jax.random.normal(kx, (2, 4, 16, 16), dtype=jnp.float32)   # NCHW
    y = jax.random.normal(ky, (2, 16), dtype=jnp.float32)
    z = jax.random.normal(kz, (2, 8, 32), dtype=jnp.float32)
    w = jax.random.normal(kw, (2, 4, 8, 8), dtype=jnp.float32)     # NCHW

    outs = jax.block_until_ready(relu4(x, y, z, w))

    # Correctness check against plain-JAX reference.
    refs = tuple(jnp.maximum(a, 0) for a in (x, y, z, w))
    for o, r in zip(outs, refs):
        assert o.shape == r.shape and o.dtype == r.dtype
        assert jnp.allclose(o, r), "mismatch vs reference ReLU"

    print("KERNEL_OK")
</pallas_src>

<mosaic_0001>
module attributes {stable_mosaic.version = 11 : i64} {
  func.func @_relu_slab_kernel(%arg0: memref<32x128xf32, #tpu.memory_space<vmem>>, %arg1: memref<32x128xf32, #tpu.memory_space<vmem>>) attributes {dimension_semantics = [], scalar_prefetch = 0 : i64, scratch_operands = 0 : i64, tpu.core_type = #tpu.core_type<tc>} {
    %c0 = arith.constant 0 : index
    %c0_0 = arith.constant 0 : index
    %0 = vector.load %arg0[%c0, %c0_0] : memref<32x128xf32, #tpu.memory_space<vmem>>, vector<32x128xf32>
    %cst = arith.constant 0.000000e+00 : f32
    %1 = vector.broadcast %cst : f32 to vector<32x128xf32>
    %2 = arith.maximumf %0, %1 : vector<32x128xf32>
    %c0_1 = arith.constant 0 : index
    %c0_2 = arith.constant 0 : index
    %3 = vector.load %arg1[%c0_1, %c0_2] : memref<32x128xf32, #tpu.memory_space<vmem>>, vector<32x128xf32>
    tpu.vector_store %arg1[%c0_1, %c0_2], %2 {strides = array<i32>} : memref<32x128xf32, #tpu.memory_space<vmem>>, vector<32x128xf32>,
    return
  }
}

</mosaic_0001>

<llo_original>
// kernel: relu4.1
$region0: #{relu4.1}
  #allocation0 [shape = 'u32[]', space=smem, size = 0x4, offset = 0x4, fixed_abs, tag = 'smem constant byte address 0x4 - core index']
  #allocation1 [shape = 'u32[144,128]{1,0:T(1,128)}', space=vmem, size = 0x12000, scoped, tag = 'internal scratch']
  %s0 = inlined_call_operand.vmem [shape: f32[32,128], index: 0, kind: input, shape index: {}]
  %s1 = inlined_call_operand.vmem [shape: f32[32,128], index: 1, kind: output, shape index: {}]
  %s2 = sld [smem:[#allocation0]]
  $region14: #{relu4.1} parent=0
    _
  %s4 = ssub.s32 1, %s2
  %s5 = scalar_select 0, %s4, %s2
  // Predicated region
  $region2: #{relu4.1} parent=0 // pred_check
    _
  $region3: #{relu4.1} parent=0 // pred_check_branch
    %7 = sbr.rel (0) target = $region5
  $region4: #{relu4.1} parent=0 // pred_region
    _
  $region5: #{relu4.1} parent=0 // pred_fallthru
    _
  %v8 = vld [vmem:[%s0] sm:$0xff]
  %v9 = vld [vmem:[%s0 + $0x8] sm:$0xff]
  %v10 = vld [vmem:[%s0 + $0x10] sm:$0xff]
  %v11 = vld [vmem:[%s0 + $0x18] sm:$0xff]
  %v12 = vmax.f32 %v8, 0.0
  %v13 = vmax.f32 %v9, 0.0
  %v14 = vmax.f32 %v10, 0.0
  %v15 = vmax.f32 %v11, 0.0
  %16 = vst [vmem:[%s1] sm:$0xff] %v12
  %17 = vst [vmem:[%s1 + $0x8] sm:$0xff] %v13
  %18 = vst [vmem:[%s1 + $0x10] sm:$0xff] %v14
  %19 = vst [vmem:[%s1 + $0x18] sm:$0xff] %v15
  // Predicated region
  $region6: #{relu4.1} parent=0 // pred_check
    _
  $region7: #{relu4.1} parent=0 // pred_check_branch
    %21 = sbr.rel (0) target = $region9
  $region8: #{relu4.1} parent=0 // pred_region
    _
  $region9: #{relu4.1} parent=0 // pred_fallthru
    _
  // Predicated region
  $region10: #{relu4.1} parent=0 // pred_check
    _
  $region11: #{relu4.1} parent=0 // pred_check_branch
    %23 = sbr.rel (0) target = $region13
  $region12: #{relu4.1} parent=0 // pred_region
    _
  $region13: #{relu4.1} parent=0 // pred_fallthru
    _

</llo_original>
